<compile_context>
chip_gen: v5e
topology: v5e:2x2
jax: 0.10.0
libtpu: 0.0.40
codegen_flags: <defaults>
</compile_context>

<pallas_src>
import functools

import jax
import jax.numpy as jnp
from jax.experimental import pallas as pl
from jax.experimental.pallas import tpu as pltpu


_DEFAULT_VMEM_BYTES = 64 << 20  # conservative (v7x-sized) fallback


def _vmem_capacity_bytes():
    """Physical VMEM per TensorCore (128 MiB v5e/v6e, 64 MiB v7x)."""
    try:
        info = pltpu.get_tpu_info()
        cap = int(getattr(info, "vmem_capacity_bytes", 0))
        if cap > 0:
            return cap
    except Exception:
        pass
    return _DEFAULT_VMEM_BYTES


# ---------------------------------------------------------------------------
# Resident fast path: whole (N, R, L) slab in VMEM, one HBM read + one write.
# Loops over N so f32 temporaries stay (R, L)-sized (keeps the footprint to
# ~ input slab + output slab, enabling a large resident threshold).
# ---------------------------------------------------------------------------
def _bn_resident_kernel(x_ref, gamma_ref, beta_ref, o_ref, *, eps, inv_count):
    n_batch, n_rows, _ = x_ref.shape

    def stats_body(n, carry):
        s, sq = carry
        x = x_ref[n].astype(jnp.float32)                        # (R, L)
        s = s + jnp.sum(x, axis=-1, keepdims=True)
        sq = sq + jnp.sum(x * x, axis=-1, keepdims=True)
        return s, sq

    zeros = jnp.zeros((n_rows, 1), jnp.float32)
    s, sq = jax.lax.fori_loop(0, n_batch, stats_body, (zeros, zeros))

    mean = s * inv_count
    # Clamp: E[x^2] - mean^2 can go slightly negative (cancellation).
    var = jnp.maximum(sq * inv_count - mean * mean, 0.0)
    scale = jax.lax.rsqrt(var + eps) * gamma_ref[...]            # (R, 1)
    shift = beta_ref[...] - mean * scale

    def norm_body(n, _):
        x = x_ref[n].astype(jnp.float32)
        o_ref[n] = (x * scale + shift).astype(o_ref.dtype)
        return 0

    jax.lax.fori_loop(0, n_batch, norm_body, 0)


def _bn_resident(x3d, gamma_rows, beta_rows, eps, inv_count, vmem_limit):
    N, R, L = x3d.shape
    return pl.pallas_call(
        functools.partial(_bn_resident_kernel, eps=eps, inv_count=inv_count),
        out_shape=jax.ShapeDtypeStruct((N, R, L), x3d.dtype),
        in_specs=[
            pl.BlockSpec((N, R, L), lambda: (0, 0, 0)),
            pl.BlockSpec((R, 1), lambda: (0, 0)),
            pl.BlockSpec((R, 1), lambda: (0, 0)),
        ],
        out_specs=pl.BlockSpec((N, R, L), lambda: (0, 0, 0)),
        compiler_params=pltpu.CompilerParams(vmem_limit_bytes=vmem_limit),
    )(x3d, gamma_rows, beta_rows)


# ---------------------------------------------------------------------------
# Tiled pass 1: per-(n, row) partial sum / sum-of-squares.  The output block
# is indexed by n only (accumulates across the lane-tile axis), so the batch
# axis is megacore-"parallel" on v7x.  Ragged last lane-tile masked via iota.
# ---------------------------------------------------------------------------
def _bn_stats_kernel(x_ref, sum_ref, sq_ref, *, valid_l, tile_l):
    l = pl.program_id(1)

    @pl.when(l == 0)
    def _init():
        sum_ref[...] = jnp.zeros_like(sum_ref)
        sq_ref[...] = jnp.zeros_like(sq_ref)

    x = x_ref[...].astype(jnp.float32)                           # (R, TL)
    if valid_l % tile_l != 0:
        # Ragged last tile: zero out-of-range lanes before they hit the stats.
        lane = jax.lax.broadcasted_iota(jnp.int32, x.shape, 1)
        x = jnp.where(l * tile_l + lane < valid_l, x, 0.0)
    sum_ref[...] += jnp.sum(x, axis=-1, keepdims=True)           # (R, 1)
    sq_ref[...] += jnp.sum(x * x, axis=-1, keepdims=True)        # (R, 1)


# ---------------------------------------------------------------------------
# Tiled pass 2: y = x * scale + shift.  Fully parallel over (N, L-tiles);
# out-of-range lanes of the ragged last tile are dropped by the masked store.
# ---------------------------------------------------------------------------
def _bn_normalize_kernel(x_ref, scale_ref, shift_ref, o_ref):
    x = x_ref[...].astype(jnp.float32)                           # (R, TL)
    o_ref[...] = (x * scale_ref[...] + shift_ref[...]).astype(o_ref.dtype)


def _pick_lane_tile(L, R, max_tile_bytes):
    """Lane-tile width: multiple of 128, >= 512 lanes where possible, sized so
    the f32 (R, TL) tile fits max_tile_bytes.  Ragged tails use a cdiv grid
    with masked stats reads (no host-side padding / extra HBM traffic)."""
    l128 = (L // 128) * 128
    if l128 < 512:
        # Small spatial extent: single full-width block (block dim == array
        # dim is always legal), grid over L collapses to 1.
        return L
    budget_tl = max(512, (max_tile_bytes // (R * 4)) // 128 * 128)
    return min(l128, budget_tl)


def _bn_tiled(x3d, gamma_rows, beta_rows, eps, inv_count, vmem_cap, donate_x):
    N, R, L = x3d.shape
    itemsize = jnp.dtype(x3d.dtype).itemsize

    # Generation-aware tile budget: ~4 MiB f32 tiles on v7x (64 MiB VMEM),
    # ~8 MiB on v5e/v6e (128 MiB VMEM) -> fewer grid steps, longer DMA bursts.
    max_tile_bytes = max(2 << 20, vmem_cap // 16)
    TL = _pick_lane_tile(L, R, max_tile_bytes)
    num_l = pl.cdiv(L, TL)

    tile_in = R * TL * itemsize
    tile_f32 = R * TL * 4
    # Double-buffered in + out tiles, f32 compute temps, headroom; clamped to
    # the physical VMEM of the generation (64 MiB v7x / 128 MiB v5e-v6e).
    vmem_limit = 4 * tile_in + 2 * tile_f32 + (4 << 20)
    vmem_limit = int(min(max(vmem_limit, 32 << 20), vmem_cap - (8 << 20)))

    # --- Pass 1: per-batch partial statistics -------------------------------
    part_sum, part_sq = pl.pallas_call(
        functools.partial(_bn_stats_kernel, valid_l=L, tile_l=TL),
        out_shape=(
            jax.ShapeDtypeStruct((N, R, 1), jnp.float32),
            jax.ShapeDtypeStruct((N, R, 1), jnp.float32),
        ),
        grid_spec=pltpu.PrefetchScalarGridSpec(
            num_scalar_prefetch=0,
            grid=(N, num_l),
            in_specs=[pl.BlockSpec((None, R, TL), lambda n, l: (n, 0, l))],
            out_specs=[
                pl.BlockSpec((None, R, 1), lambda n, l: (n, 0, 0)),
                pl.BlockSpec((None, R, 1), lambda n, l: (n, 0, 0)),
            ],
        ),
        compiler_params=pltpu.CompilerParams(
            dimension_semantics=("parallel", "arbitrary"),
            vmem_limit_bytes=vmem_limit,
        ),
    )(x3d)

    # Tiny (N, R) -> (R,) finalize in plain JAX: negligible next to streaming.
    s = jnp.sum(part_sum, axis=0)                                # (R, 1)
    sq = jnp.sum(part_sq, axis=0)                                # (R, 1)
    mean = s * inv_count
    var = jnp.maximum(sq * inv_count - mean * mean, 0.0)         # clamp
    scale = jax.lax.rsqrt(var + eps) * gamma_rows
    shift = beta_rows - mean * scale

    # --- Pass 2: normalize ---------------------------------------------------
    out3d = pl.pallas_call(
        _bn_normalize_kernel,
        out_shape=jax.ShapeDtypeStruct((N, R, L), x3d.dtype),
        grid_spec=pltpu.PrefetchScalarGridSpec(
            num_scalar_prefetch=0,
            grid=(N, num_l),
            in_specs=[
                pl.BlockSpec((None, R, TL), lambda n, l: (n, 0, l)),
                pl.BlockSpec((R, 1), lambda n, l: (0, 0)),
                pl.BlockSpec((R, 1), lambda n, l: (0, 0)),
            ],
            out_specs=pl.BlockSpec((None, R, TL), lambda n, l: (n, 0, l)),
        ),
        compiler_params=pltpu.CompilerParams(
            dimension_semantics=("parallel", "parallel"),
            vmem_limit_bytes=vmem_limit,
        ),
        # Optional in-place overwrite of x's HBM buffer (halves peak HBM
        # footprint for big activations when the caller no longer needs x).
        input_output_aliases=({0: 0} if donate_x else {}),
    )(x3d, scale, shift)

    return out3d


def batchnorm_complex(x, gamma_real, beta_real, eps=1e-5, force_tiled=False,
                      donate_x=False):
    """x: (N, 2, C, H, W). gamma_real/beta_real: (C,) -- bn_real's parameters.

    Reproduces BatchNormComplex.forward in training mode.  bn_imag's
    parameters exist in the PyTorch module but are never used by forward.
    """
    N, two, C, H, W = x.shape
    assert two == 2
    R = 2 * C
    L = H * W
    inv_count = 1.0 / float(N * L)

    # Free, contiguous reshape -- no HBM transposes.
    x3d = x.reshape(N, R, L)

    # Both components use bn_real's affine params (matches the reference).
    gamma_rows = jnp.tile(gamma_real.astype(jnp.float32), 2).reshape(R, 1)
    beta_rows = jnp.tile(beta_real.astype(jnp.float32), 2).reshape(R, 1)

    vmem_cap = _vmem_capacity_bytes()
    itemsize = jnp.dtype(x.dtype).itemsize

    # Resident footprint: input + output slabs plus per-batch f32 temporaries
    # (the resident kernel loops over N, so temps are (R, L)-sized).
    resident_bytes = N * R * L * 2 * itemsize + 3 * R * L * 4 + (1 << 20)
    # Generation-aware threshold: ~3/4 of physical VMEM (~48 MiB on v7x,
    # ~96 MiB on v5e/v6e).  Resident path = 1 read + 1 write (vs 2r + 1w).
    resident_budget = (vmem_cap * 3) // 4

    if (not force_tiled) and resident_bytes <= resident_budget:
        vmem_limit = int(min(max(resident_bytes + (8 << 20), 32 << 20),
                             vmem_cap - (4 << 20)))
        out3d = _bn_resident(x3d, gamma_rows, beta_rows, eps, inv_count,
                             vmem_limit)
    else:
        out3d = _bn_tiled(x3d, gamma_rows, beta_rows, eps, inv_count,
                          vmem_cap, donate_x)

    return out3d.reshape(N, 2, C, H, W)


def _reference(x, gamma_real, beta_real, eps=1e-5):
    """Pure-JAX reference mirroring PyTorch BatchNorm2d training-mode forward."""
    def bn(part):  # part: (N, C, H, W)
        mean = jnp.mean(part, axis=(0, 2, 3), keepdims=True)
        var = jnp.mean((part - mean) ** 2, axis=(0, 2, 3), keepdims=True)
        g = gamma_real.reshape(1, -1, 1, 1)
        b = beta_real.reshape(1, -1, 1, 1)
        return (part - mean) / jnp.sqrt(var + eps) * g + b

    out_real = bn(x[:, 0])
    out_imag = bn(x[:, 1])  # bn_real params, imag's own batch stats
    return jnp.stack([out_real, out_imag], axis=1)


if __name__ == "__main__":
    key = jax.random.PRNGKey(0)
    k_x, k_g, k_b, k_x2 = jax.random.split(key, 4)

    # Shape 1: (2, 2, 4, 16, 16) -- resident fast path + forced tiled path.
    N, C, H, W = 2, 4, 16, 16
    x = jax.random.normal(k_x, (N, 2, C, H, W), dtype=jnp.float32)
    gamma_real = 1.0 + 0.1 * jax.random.normal(k_g, (C,), dtype=jnp.float32)
    beta_real = 0.1 * jax.random.normal(k_b, (C,), dtype=jnp.float32)

    ref = _reference(x, gamma_real, beta_real)
    out_auto = jax.block_until_ready(batchnorm_complex(x, gamma_real, beta_real))
    assert out_auto.shape == (N, 2, C, H, W)
    assert jnp.allclose(out_auto, ref, atol=1e-4, rtol=1e-4)

    out_tiled = jax.block_until_ready(
        batchnorm_complex(x, gamma_real, beta_real, force_tiled=True))
    assert jnp.allclose(out_tiled, ref, atol=1e-4, rtol=1e-4)

    # Shape 2: ragged spatial extent (H*W = 900, not a multiple of 128) and an
    # odd channel count -> exercises the masked-tail stats path when tiled.
    N2, C2, H2, W2 = 2, 3, 30, 30
    x2 = jax.random.normal(k_x2, (N2, 2, C2, H2, W2), dtype=jnp.float32)
    g2 = gamma_real[:C2]
    b2 = beta_real[:C2]
    ref2 = _reference(x2, g2, b2)

    out2_auto = jax.block_until_ready(batchnorm_complex(x2, g2, b2))
    assert jnp.allclose(out2_auto, ref2, atol=1e-4, rtol=1e-4)

    out2_tiled = jax.block_until_ready(
        batchnorm_complex(x2, g2, b2, force_tiled=True))
    assert jnp.allclose(out2_tiled, ref2, atol=1e-4, rtol=1e-4)

    print("KERNEL_OK")
</pallas_src>

<mosaic_0001>
module attributes {stable_mosaic.version = 11 : i64} {
  func.func @_bn_resident_kernel(%arg0: memref<2x8x256xf32, #tpu.memory_space<vmem>>, %arg1: memref<8x1xf32, #tpu.memory_space<vmem>>, %arg2: memref<8x1xf32, #tpu.memory_space<vmem>>, %arg3: memref<2x8x256xf32, #tpu.memory_space<vmem>>) attributes {dimension_semantics = [], scalar_prefetch = 0 : i64, scratch_operands = 0 : i64, tpu.core_type = #tpu.core_type<tc>} {
    %cst = arith.constant 0.000000e+00 : f32
    %0 = vector.broadcast %cst : f32 to vector<8x1xf32>
    %c0_i32 = arith.constant 0 : i32
    %c2_i32 = arith.constant 2 : i32
    %1 = arith.addi %c0_i32, %c2_i32 : i32
    %c1_i32 = arith.constant 1 : i32
    %2:2 = scf.for %arg4 = %c0_i32 to %1 step %c1_i32 iter_args(%arg5 = %0, %arg6 = %0) -> (vector<8x1xf32>, vector<8x1xf32>)  : i32 {
      %20 = arith.index_cast %arg4 : i32 to index
      %c0_12 = arith.constant 0 : index
      %c0_13 = arith.constant 0 : index
      %21 = vector.load %arg0[%20, %c0_12, %c0_13] : memref<2x8x256xf32, #tpu.memory_space<vmem>>, vector<1x8x256xf32>
      %22 = vector.shape_cast %21 : vector<1x8x256xf32> to vector<8x256xf32>
      %cst_14 = arith.constant dense<0.000000e+00> : vector<8xf32>
      %23 = vector.multi_reduction <add>, %22, %cst_14 [1] : vector<8x256xf32> to vector<8xf32>
      %24 = vector.shape_cast %23 : vector<8xf32> to vector<8x1xf32>
      %25 = arith.addf %arg5, %24 : vector<8x1xf32>
      %26 = arith.mulf %22, %22 : vector<8x256xf32>
      %cst_15 = arith.constant dense<0.000000e+00> : vector<8xf32>
      %27 = vector.multi_reduction <add>, %26, %cst_15 [1] : vector<8x256xf32> to vector<8xf32>
      %28 = vector.shape_cast %27 : vector<8xf32> to vector<8x1xf32>
      %29 = arith.addf %arg6, %28 : vector<8x1xf32>
      scf.yield %25, %29 : vector<8x1xf32>, vector<8x1xf32>
    }
    %c2_i32_0 = arith.constant 2 : i32
    %cst_1 = arith.constant 0.001953125 : f32
    %3 = vector.broadcast %cst_1 : f32 to vector<8x1xf32>
    %4 = arith.mulf %2#0, %3 : vector<8x1xf32>
    %cst_2 = arith.constant 0.001953125 : f32
    %5 = vector.broadcast %cst_2 : f32 to vector<8x1xf32>
    %6 = arith.mulf %2#1, %5 : vector<8x1xf32>
    %7 = arith.mulf %4, %4 : vector<8x1xf32>
    %8 = arith.subf %6, %7 : vector<8x1xf32>
    %cst_3 = arith.constant 0.000000e+00 : f32
    %9 = vector.broadcast %cst_3 : f32 to vector<8x1xf32>
    %10 = arith.maximumf %8, %9 : vector<8x1xf32>
    %cst_4 = arith.constant 9.99999974E-6 : f32
    %11 = vector.broadcast %cst_4 : f32 to vector<8x1xf32>
    %12 = arith.addf %10, %11 : vector<8x1xf32>
    %13 = math.rsqrt %12 : vector<8x1xf32>
    %c0 = arith.constant 0 : index
    %c0_5 = arith.constant 0 : index
    %14 = vector.load %arg1[%c0, %c0_5] : memref<8x1xf32, #tpu.memory_space<vmem>>, vector<8x1xf32>
    %15 = arith.mulf %13, %14 : vector<8x1xf32>
    %c0_6 = arith.constant 0 : index
    %c0_7 = arith.constant 0 : index
    %16 = vector.load %arg2[%c0_6, %c0_7] : memref<8x1xf32, #tpu.memory_space<vmem>>, vector<8x1xf32>
    %17 = arith.mulf %4, %15 : vector<8x1xf32>
    %18 = arith.subf %16, %17 : vector<8x1xf32>
    %c0_i32_8 = arith.constant 0 : i32
    %c2_i32_9 = arith.constant 2 : i32
    %19 = arith.addi %c0_i32_8, %c2_i32_9 : i32
    %c1_i32_10 = arith.constant 1 : i32
    scf.for %arg4 = %c0_i32_8 to %19 step %c1_i32_10  : i32 {
      %20 = arith.index_cast %arg4 : i32 to index
      %c0_12 = arith.constant 0 : index
      %c0_13 = arith.constant 0 : index
      %21 = vector.load %arg0[%20, %c0_12, %c0_13] : memref<2x8x256xf32, #tpu.memory_space<vmem>>, vector<1x8x256xf32>
      %22 = vector.shape_cast %21 : vector<1x8x256xf32> to vector<8x256xf32>
      %23 = vector.broadcast %15 : vector<8x1xf32> to vector<8x256xf32>
      %24 = arith.mulf %22, %23 : vector<8x256xf32>
      %25 = vector.broadcast %18 : vector<8x1xf32> to vector<8x256xf32>
      %26 = arith.addf %24, %25 : vector<8x256xf32>
      %27 = arith.index_cast %arg4 : i32 to index
      %c0_14 = arith.constant 0 : index
      %c0_15 = arith.constant 0 : index
      %28 = vector.load %arg3[%27, %c0_14, %c0_15] : memref<2x8x256xf32, #tpu.memory_space<vmem>>, vector<1x8x256xf32>
      %29 = vector.shape_cast %28 : vector<1x8x256xf32> to vector<8x256xf32>
      %30 = vector.shape_cast %26 : vector<8x256xf32> to vector<1x8x256xf32>
      tpu.vector_store %arg3[%27, %c0_14, %c0_15], %30 {strides = array<i32>} : memref<2x8x256xf32, #tpu.memory_space<vmem>>, vector<1x8x256xf32>,
    }
    %c2_i32_11 = arith.constant 2 : i32
    return
  }
}

</mosaic_0001>

<llo_original>
// kernel: tpu_custom_call.1
$region0: #{tpu_custom_call.1}
  #allocation0 [shape = 'u32[]', space=smem, size = 0x4, offset = 0x4, fixed_abs, tag = 'smem constant byte address 0x4 - core index']
  #allocation1 [shape = 'u32[72,128]{1,0:T(1,128)}', space=vmem, size = 0x9000, scoped, tag = 'internal scratch']
  %s0 = inlined_call_operand.hbm [shape: f32[2,8,256], index: 0, kind: input, shape index: {}]
  %s1 = inlined_call_operand.vmem [shape: f32[8,1], index: 1, kind: input, shape index: {}]
  %s2 = inlined_call_operand.vmem [shape: f32[8,1], index: 2, kind: input, shape index: {}]
  %s3 = inlined_call_operand.hbm [shape: f32[2,8,256], index: 3, kind: output, shape index: {}]
  %s4 = sld [smem:[#allocation0]]
  $region40: #{tpu_custom_call.1} parent=0
    _
  %s6 = ssub.s32 1, %s4
  %s7 = scalar_select 0, %s6, %s4
  $region1: #{tpu_custom_call.1} parent=0
    #allocation2 [shape = 'u8[16384]{0}', space=vmem, size = 0x4000, scoped, tag = 'input window, operand 0, single buffered']
    #allocation3 [shape = 's32[1]{0}', space=sflag, size = 0x4, scoped, tag = 'scoped memory for tpu_custom_call.1']
    #allocation4 [shape = 's32[1]{0}', space=sflag, size = 0x4, scoped, tag = 'scoped memory for tpu_custom_call.1']
    #allocation5 [shape = 'u8[16384]{0}', space=vmem, size = 0x4000, scoped, tag = 'output window, operand 0, single buffered']
    %8 = vsyncpa [#allocation3], 0
    %9 = vsyncpa [#allocation4], 0
    // Predicated region
    $region2: #{tpu_custom_call.1} parent=1 // pred_check
      _
    $region3: #{tpu_custom_call.1} parent=1 // pred_check_branch
      %11 = sbr.rel (0) target = $region5
    $region4: #{tpu_custom_call.1} parent=1 // pred_region
      %13 = vsyncadd [#allocation3], 0
      %s14 = sshll.u32 %s0, 4
      %s15 = int_to_ptr.hbm [resolvable:$true] %s14
      %s16 = sshll.u32 [#allocation2], 4
      %s17 = int_to_ptr.vmem [resolvable:$true] %s16
      %22 = dma.hbm_to_vmem [thread:$0]  %s15, 512, %s17, [#allocation3], 256, 256, 16
    $region5: #{tpu_custom_call.1} parent=1 // pred_fallthru
      _
    // Predicated region
    $region6: #{tpu_custom_call.1} parent=1 // pred_check
      _
    $region7: #{tpu_custom_call.1} parent=1 // pred_check_branch
      %24 = sbr.rel (0) target = $region9
    $region8: #{tpu_custom_call.1} parent=1 // pred_region
      _
    $region9: #{tpu_custom_call.1} parent=1 // pred_fallthru
      _
    // Predicated region
    $region10: #{tpu_custom_call.1} parent=1 // pred_check
      _
    $region11: #{tpu_custom_call.1} parent=1 // pred_check_branch
      %26 = sbr.rel (0) target = $region13
    $region12: #{tpu_custom_call.1} parent=1 // pred_region
      _
    $region13: #{tpu_custom_call.1} parent=1 // pred_fallthru
      _
    // Predicated region
    $region14: #{tpu_custom_call.1} parent=1 // pred_check
      _
    $region15: #{tpu_custom_call.1} parent=1 // pred_check_branch
      %28 = sbr.rel (0) target = $region17
    $region16: #{tpu_custom_call.1} parent=1 // pred_region
      %30 = dma.done [#allocation3], 512
    $region17: #{tpu_custom_call.1} parent=1 // pred_fallthru
      _
    loop: start=0, step=1, limit=2
    $region18: #{tpu_custom_call.1} parent=1 // loop_pre_header
      _
    $region19: #{tpu_custom_call.1} parent=1 // loop_header
      %s32 = sphi 0, %s36
      %p33 = scmp.ge.s32.totalorder %s32, 2
      %v37 = vphi 0.0, %v47
      %v38 = vphi 0.0, %v53
    $region20: #{tpu_custom_call.1} parent=1 // loop_header_branch
      %35 = sbr.rel (%p33) target = $region24
    $region21: #{tpu_custom_call.1} parent=1 // loop_body
      %s39 = smul.u32 %s32, 2
      %s40 = smul.addr %s39, 8
      %s41 = scalar_lea.vmem [#allocation2], %s40
      %v42 = vld [vmem:[%s41] sm:$0xff]
      %v43 = vld [vmem:[%s41 + $0x8] sm:$0xff]
      %v44 = vadd.f32 %v42, %v43
      %45 = vadd.xlane.f32.xlu0 %v44
      %v46 = vpop.xlane.xlu0 %45
      %v47 = vadd.f32 %v37, %v46
      %v48 = vmul.f32 %v42, %v42
      %v49 = vmul.f32 %v43, %v43
      %v50 = vadd.f32 %v48, %v49
      %51 = vadd.xlane.f32.xlu0 %v50
      %v52 = vpop.xlane.xlu0 %51
      %v53 = vadd.f32 %v38, %v52
    $region22: #{tpu_custom_call.1} parent=1 // loop_footer
      %s36 = sadd.s32 1, %s32
    $region23: #{tpu_custom_call.1} parent=1 // loop_footer_branch
      %31 = sbr.rel target = $region19
    $region24: #{tpu_custom_call.1} parent=1 // loop_exit
      _
    %v54 = vmul.f32 %v37, 0.001953125
    %v55 = vmul.f32 %v38, 0.001953125
    %v56 = vmul.f32 %v54, %v54
    %v57 = vsub.f32 %v55, %v56
    %v58 = vmax.f32 %v57, 0.0
    %v59 = vadd.f32 %v58, 1e-05
    %v60 = vrsqrt.pop %v59
    %v61 = vmul.f32 %v60, %v59
    %v62 = vmul.f32 %v61, %v60
    %v63 = vmul.f32 0.5, %v62
    %v64 = vsub.f32 1.5, %v63
    %v65 = vmul.f32 %v60, %v64
    %vm66 = vweird.f32 %v59
    %vm67 = vweird.f32 %v60
    %vm68 = vmor %vm66, %vm67
    %v69 = vsel %vm68, %v60, %v65
    %v70 = vld [vmem:[%s1] sm:$0xff]
    %v71 = vmul.f32 %v69, %v70
    %v72 = vld [vmem:[%s2] sm:$0xff]
    %v73 = vmul.f32 %v54, %v71
    %v74 = vsub.f32 %v72, %v73
    loop: start=0, step=1, limit=2
    $region25: #{tpu_custom_call.1} parent=1 // loop_pre_header
      _
    $region26: #{tpu_custom_call.1} parent=1 // loop_header
      %s76 = sphi 0, %s80
      %p77 = scmp.ge.s32.totalorder %s76, 2
    $region27: #{tpu_custom_call.1} parent=1 // loop_header_branch
      %79 = sbr.rel (%p77) target = $region31
    $region28: #{tpu_custom_call.1} parent=1 // loop_body
      %s81 = smul.u32 %s76, 2
      %s82 = smul.addr %s81, 8
      %s83 = scalar_lea.vmem [#allocation2], %s82
      %v84 = vld [vmem:[%s83] sm:$0xff]
      %v85 = vld [vmem:[%s83 + $0x8] sm:$0xff]
      %87 = vset.pattern.permute.xlu0 0
      %88 = vperm.xlu0 %87, %v71
      %v89 = vpop.permute.xlu0 %88
      %v91 = vmul.f32 %v84, %v89
      %v92 = vmul.f32 %v85, %v89
      %94 = vset.pattern.permute.xlu0 0
      %95 = vperm.xlu0 %94, %v74
      %v96 = vpop.permute.xlu0 %95
      %v98 = vadd.f32 %v91, %v96
      %v99 = vadd.f32 %v92, %v96
      %s100 = smul.addr %s81, 8
      %s101 = scalar_lea.vmem [#allocation5], %s100
      %102 = vst [vmem:[%s101] sm:$0xff] %v98
      %103 = vst [vmem:[%s101 + $0x8] sm:$0xff] %v99
    $region29: #{tpu_custom_call.1} parent=1 // loop_footer
      %s80 = sadd.s32 1, %s76
    $region30: #{tpu_custom_call.1} parent=1 // loop_footer_branch
      %75 = sbr.rel target = $region26
    $region31: #{tpu_custom_call.1} parent=1 // loop_exit
      _
    // Predicated region
    $region32: #{tpu_custom_call.1} parent=1 // pred_check
      _
    $region33: #{tpu_custom_call.1} parent=1 // pred_check_branch
      %105 = sbr.rel (0) target = $region35
    $region34: #{tpu_custom_call.1} parent=1 // pred_region
      %107 = vsyncadd [#allocation4], 0
      %s108 = sshll.u32 [#allocation5], 4
      %s109 = int_to_ptr.vmem [resolvable:$true] %s108
      %s110 = sshll.u32 %s3, 4
      %s111 = int_to_ptr.hbm [resolvable:$true] %s110
      %116 = dma.vmem_to_hbm [thread:$0]  %s109, 512, %s111, [#allocation4], 256, 256, 16
    $region35: #{tpu_custom_call.1} parent=1 // pred_fallthru
      _
    // Predicated region
    $region36: #{tpu_custom_call.1} parent=1 // pred_check
      _
    $region37: #{tpu_custom_call.1} parent=1 // pred_check_branch
      %118 = sbr.rel (0) target = $region39
    $region38: #{tpu_custom_call.1} parent=1 // pred_region
      %120 = dma.done [#allocation4], 512
    $region39: #{tpu_custom_call.1} parent=1 // pred_fallthru
      _
    %121 = vsyncpa [#allocation3], 1
    %122 = vsyncpa [#allocation4], 1

</llo_original>
